<compile_context>
chip_gen: v7x
topology: tpu7x:2x2x1
jax: 0.10.0
libtpu: 0.0.40
codegen_flags: <defaults>
</compile_context>

<pallas_src>
import functools

import jax
import jax.numpy as jnp
from jax.experimental import pallas as pl
from jax.experimental.pallas import tpu as pltpu

LN_EPS = 1e-5
NEG_INF = -1e30


def _round_up(x, m):
    return (x + m - 1) // m * m


def _tpu_generation():
    """Best-effort TPU generation detection ('v5' / 'v6' / 'v7' / None)."""
    try:
        kind = jax.devices()[0].device_kind.lower()
    except Exception:
        return None
    for g in ("v7", "v6", "v5"):
        if g in kind:
            return g
    return None


def _layernorm_relu(x, gamma, beta, compute_dtype):
    # Reductions + rsqrt stay in f32 (XLU/EUP); the normalize/scale/bias/ReLU
    # elementwise chain runs in compute_dtype (bf16 on v6e/v7x, f32 on v5e).
    mu = jnp.mean(x, axis=-1, keepdims=True)
    ms = jnp.mean(x * x, axis=-1, keepdims=True)
    var = jnp.maximum(ms - mu * mu, 0.0)          # clamp: cancellation guard
    scale = jax.lax.rsqrt(var + LN_EPS)
    xc = x.astype(compute_dtype)
    y = (xc - mu.astype(compute_dtype)) * scale.astype(compute_dtype)
    y = y * gamma.astype(compute_dtype) + beta.astype(compute_dtype)
    return jnp.maximum(y, 0.0)                    # ReLU (Dropout = identity)


def actor_kernel(x_ref, w1_ref, w2_ref, w3_ref, vec_ref, out_ref, *,
                 compute_dtype):
    f1 = w1_ref.shape[1]
    f2 = w2_ref.shape[1]
    npad = w3_ref.shape[1]

    vec = vec_ref[...]                            # packed f32 bias/scale rows
    b1, g1, be1 = vec[0:1, :f1], vec[1:2, :f1], vec[2:3, :f1]
    b2, g2, be2 = vec[3:4, :f2], vec[4:5, :f2], vec[5:6, :f2]
    b3 = vec[6:7, :npad]

    # fc1 + LayerNorm + ReLU (+ Dropout as identity in eval mode)
    x = x_ref[...].astype(w1_ref.dtype)
    h = jnp.dot(x, w1_ref[...], preferred_element_type=jnp.float32) + b1
    h = _layernorm_relu(h, g1, be1, compute_dtype)

    # fc2 + LayerNorm + ReLU (+ Dropout as identity in eval mode)
    h = jnp.dot(h.astype(w2_ref.dtype), w2_ref[...],
                preferred_element_type=jnp.float32) + b2
    h = _layernorm_relu(h, g2, be2, compute_dtype)

    # lane-padded output head + softmax (padded logits = -1e30 -> prob 0)
    logits = jnp.dot(h.astype(w3_ref.dtype), w3_ref[...],
                     preferred_element_type=jnp.float32) + b3
    m = jnp.max(logits, axis=-1, keepdims=True)
    e = jnp.exp(logits - m)
    s = jnp.sum(e, axis=-1, keepdims=True)
    r = pl.reciprocal(s, approx=True)
    r = r * (2.0 - s * r)                         # one Newton step -> f32 acc.
    out_ref[...] = (e * r).astype(out_ref.dtype)


def actor_forward(state, params, *, tile_b_max=1024, min_grid_steps=None,
                  compute_dtype=None, out_dtype=None, keep_padded=False):
    """state: (B, D_in) float32/bfloat16. Returns softmax probabilities.

    Default return is (B, n_actions); keep_padded=True returns the raw
    lane-dense (B_pad, 128) buffer so a jitted consumer can fuse the slice.
    """
    assert state.ndim == 2 and state.size > 0, "Error: tensor has an empty shape!"
    B, d_in = state.shape
    w1, w2 = params["w1"], params["w2"]
    w3p, vec = params["w3p"], params["vec"]
    n_actions = params["n_actions"]
    n_pad = w3p.shape[1]

    gen = _tpu_generation()
    if min_grid_steps is None:
        # v7x shards "parallel" grid axes across its 2 TensorCores; make sure
        # it gets at least 2 steps when the batch is big enough to split.
        min_grid_steps = 2 if gen == "v7" else 1
    if compute_dtype is None:
        # bf16 VPU exists on v6e/v7x only; v5e keeps f32 elementwise math.
        compute_dtype = jnp.bfloat16 if gen in ("v6", "v7") else jnp.float32
    if out_dtype is None:
        out_dtype = jnp.bfloat16                  # halves the output HBM stream

    # Derive the batch tile from B: big enough to amortize the ~0.35us grid
    # step, never padding more than one sublane group, capped at 1024 rows so
    # double-buffered activation tiles stay well inside every scoped VMEM
    # budget (v5e 16 MiB / v6e 32 MiB / v7x 32 MiB) without a vmem_limit bump.
    num_tiles = max(pl.cdiv(B, tile_b_max), min_grid_steps)
    tb = _round_up(pl.cdiv(B, num_tiles), 8)
    b_pad = _round_up(B, tb)
    if b_pad != B:                                # skip the pad pass when possible
        state = jnp.pad(state, ((0, b_pad - B), (0, 0)))
    grid = (b_pad // tb,)

    resident = pl.Buffered(1)                     # weights: single-buffered, DMA'd once
    kernel = functools.partial(actor_kernel, compute_dtype=compute_dtype)

    out = pl.pallas_call(
        kernel,
        out_shape=jax.ShapeDtypeStruct((b_pad, n_pad), out_dtype),
        grid=grid,
        in_specs=[
            pl.BlockSpec((tb, d_in), lambda i: (i, 0)),   # streamed batch tile
            pl.BlockSpec(w1.shape, lambda i: (0, 0), pipeline_mode=resident),
            pl.BlockSpec(w2.shape, lambda i: (0, 0), pipeline_mode=resident),
            pl.BlockSpec(w3p.shape, lambda i: (0, 0), pipeline_mode=resident),
            pl.BlockSpec(vec.shape, lambda i: (0, 0), pipeline_mode=resident),
        ],
        out_specs=pl.BlockSpec((tb, n_pad), lambda i: (i, 0)),
        compiler_params=pltpu.CompilerParams(
            dimension_semantics=("parallel",)),
    )(state, w1, w2, w3p, vec)

    if keep_padded:
        return out
    return out[:B, :n_actions]


def init_params(key, input_dim, fc1_dims, fc2_dims, n_actions,
                param_dtype=jnp.bfloat16):
    """Deterministic synthetic init mimicking PyTorch Linear default scaling."""
    ks = jax.random.split(key, 6)

    def lin(kw, kb, fan_in, fan_out):
        bound = float(fan_in) ** -0.5
        w = jax.random.uniform(kw, (fan_in, fan_out), jnp.float32, -bound, bound)
        b = jax.random.uniform(kb, (fan_out,), jnp.float32, -bound, bound)
        return w, b

    w1, b1 = lin(ks[0], ks[1], input_dim, fc1_dims)
    w2, b2 = lin(ks[2], ks[3], fc1_dims, fc2_dims)
    w3, b3 = lin(ks[4], ks[5], fc2_dims, n_actions)
    g1 = jnp.ones((fc1_dims,), jnp.float32)
    be1 = jnp.zeros((fc1_dims,), jnp.float32)
    g2 = jnp.ones((fc2_dims,), jnp.float32)
    be2 = jnp.zeros((fc2_dims,), jnp.float32)

    # Lane-dense padded head: zero weight columns, -1e30 bias => padded probs = 0.
    n_pad = _round_up(max(n_actions, 128), 128)
    w3p = jnp.zeros((fc2_dims, n_pad), jnp.float32).at[:, :n_actions].set(w3)

    # Pack the 7 small vectors into one (8, width) f32 array => a single DMA.
    width = max(fc1_dims, fc2_dims, n_pad)
    vec = jnp.zeros((8, width), jnp.float32)
    vec = vec.at[0, :fc1_dims].set(b1)
    vec = vec.at[1, :fc1_dims].set(g1)
    vec = vec.at[2, :fc1_dims].set(be1)
    vec = vec.at[3, :fc2_dims].set(b2)
    vec = vec.at[4, :fc2_dims].set(g2)
    vec = vec.at[5, :fc2_dims].set(be2)
    vec = vec.at[6, :].set(NEG_INF)
    vec = vec.at[6, :n_actions].set(b3)

    return dict(
        # kernel-side params (weights cast to param_dtype; small vectors stay f32)
        w1=w1.astype(param_dtype), w2=w2.astype(param_dtype),
        w3p=w3p.astype(param_dtype), vec=vec, n_actions=n_actions,
        # raw f32 params (for the pure-JAX reference)
        b1=b1, g1=g1, be1=be1, b2=b2, g2=g2, be2=be2,
        w1_f32=w1, w2_f32=w2, w3=w3, b3=b3,
    )


def _reference(state, p):
    def ln(x, g, b):
        mu = jnp.mean(x, -1, keepdims=True)
        var = jnp.mean((x - mu) ** 2, -1, keepdims=True)
        return (x - mu) / jnp.sqrt(var + LN_EPS) * g + b
    h = jnp.maximum(ln(state @ p["w1_f32"] + p["b1"], p["g1"], p["be1"]), 0.0)
    h = jnp.maximum(ln(h @ p["w2_f32"] + p["b2"], p["g2"], p["be2"]), 0.0)
    return jax.nn.softmax(h @ p["w3"] + p["b3"], axis=-1)


if __name__ == "__main__":
    B, D_IN, FC1, FC2, N_ACTIONS = 8, 32, 256, 256, 4

    key = jax.random.PRNGKey(0)
    k_state, k_params = jax.random.split(key)
    state = jax.random.normal(k_state, (B, D_IN), jnp.float32)

    # --- Strict f32 path: 1e-5 parity with the PyTorch-equivalent reference ---
    p32 = init_params(k_params, D_IN, FC1, FC2, N_ACTIONS,
                      param_dtype=jnp.float32)
    probs32 = jax.block_until_ready(
        actor_forward(state, p32,
                      compute_dtype=jnp.float32, out_dtype=jnp.float32))
    ref = _reference(state, p32)
    assert probs32.shape == (B, N_ACTIONS)
    assert jnp.allclose(jnp.sum(probs32, axis=-1), 1.0, atol=1e-5)
    assert jnp.allclose(probs32, ref, atol=1e-5, rtol=1e-5)

    # --- Default fast path: bf16 weights / output (and bf16 LN on v6e/v7x) ---
    pfast = init_params(k_params, D_IN, FC1, FC2, N_ACTIONS)
    probs_fast = jax.block_until_ready(actor_forward(state, pfast))
    probs_fast = probs_fast.astype(jnp.float32)
    assert probs_fast.shape == (B, N_ACTIONS)
    assert jnp.allclose(jnp.sum(probs_fast, axis=-1), 1.0, atol=1e-2)
    assert jnp.allclose(probs_fast, ref, atol=5e-2, rtol=5e-2)

    print("KERNEL_OK")
</pallas_src>

<mosaic_0001>
module attributes {stable_mosaic.version = 11 : i64} {
  func.func @actor_kernel(%arg0: i32, %arg1: memref<8x32xf32, #tpu.memory_space<vmem>>, %arg2: memref<32x256xf32, #tpu.memory_space<vmem>>, %arg3: memref<256x256xf32, #tpu.memory_space<vmem>>, %arg4: memref<256x128xf32, #tpu.memory_space<vmem>>, %arg5: memref<8x256xf32, #tpu.memory_space<vmem>>, %arg6: memref<8x128xf32, #tpu.memory_space<vmem>>) attributes {dimension_semantics = [#tpu.dimension_semantics<parallel>], iteration_bounds = array<i64: 1>, scalar_prefetch = 0 : i64, scratch_operands = 0 : i64, tpu.core_type = #tpu.core_type<tc>, window_params = [{transform_indices = @transform_0, window_bounds = array<i64: 8, 32>}, {pipeline_mode = #tpu.pipeline_mode<synchronous>, transform_indices = @transform_1, window_bounds = array<i64: 32, 256>}, {pipeline_mode = #tpu.pipeline_mode<synchronous>, transform_indices = @transform_2, window_bounds = array<i64: 256, 256>}, {pipeline_mode = #tpu.pipeline_mode<synchronous>, transform_indices = @transform_3, window_bounds = array<i64: 256, 128>}, {pipeline_mode = #tpu.pipeline_mode<synchronous>, transform_indices = @transform_4, window_bounds = array<i64: 8, 256>}, {transform_indices = @transform_5, window_bounds = array<i64: 8, 128>}]} {
    %c0 = arith.constant 0 : index
    %c0_0 = arith.constant 0 : index
    %0 = vector.load %arg5[%c0, %c0_0] : memref<8x256xf32, #tpu.memory_space<vmem>>, vector<8x256xf32>
    %1 = vector.extract_strided_slice %0 {offsets = [0, 0], sizes = [1, 256], strides = [1, 1]} : vector<8x256xf32> to vector<1x256xf32>
    %2 = vector.extract_strided_slice %0 {offsets = [1, 0], sizes = [1, 256], strides = [1, 1]} : vector<8x256xf32> to vector<1x256xf32>
    %3 = vector.extract_strided_slice %0 {offsets = [2, 0], sizes = [1, 256], strides = [1, 1]} : vector<8x256xf32> to vector<1x256xf32>
    %4 = vector.extract_strided_slice %0 {offsets = [3, 0], sizes = [1, 256], strides = [1, 1]} : vector<8x256xf32> to vector<1x256xf32>
    %5 = vector.extract_strided_slice %0 {offsets = [4, 0], sizes = [1, 256], strides = [1, 1]} : vector<8x256xf32> to vector<1x256xf32>
    %6 = vector.extract_strided_slice %0 {offsets = [5, 0], sizes = [1, 256], strides = [1, 1]} : vector<8x256xf32> to vector<1x256xf32>
    %7 = vector.extract_strided_slice %0 {offsets = [6, 0], sizes = [1, 128], strides = [1, 1]} : vector<8x256xf32> to vector<1x128xf32>
    %c0_1 = arith.constant 0 : index
    %c0_2 = arith.constant 0 : index
    %8 = vector.load %arg1[%c0_1, %c0_2] : memref<8x32xf32, #tpu.memory_space<vmem>>, vector<8x32xf32>
    %c0_3 = arith.constant 0 : index
    %c0_4 = arith.constant 0 : index
    %9 = vector.load %arg2[%c0_3, %c0_4] : memref<32x256xf32, #tpu.memory_space<vmem>>, vector<32x256xf32>
    %cst = arith.constant dense<0.000000e+00> : vector<8x256xf32>
    %10 = tpu.matmul %8, %9, %cst {dimension_numbers = #tpu.dot_dimension_numbers<[1], [0], [0], [1], [0, 0, 1, 1], [], []>} : vector<8x32xf32>, vector<32x256xf32>, vector<8x256xf32> -> vector<8x256xf32>
    %11 = vector.broadcast %1 : vector<1x256xf32> to vector<8x256xf32>
    %12 = arith.addf %10, %11 : vector<8x256xf32>
    %cst_5 = arith.constant dense<0.000000e+00> : vector<8xf32>
    %13 = vector.multi_reduction <add>, %12, %cst_5 [1] : vector<8x256xf32> to vector<8xf32>
    %14 = vector.shape_cast %13 : vector<8xf32> to vector<8x1xf32>
    %cst_6 = arith.constant 2.560000e+02 : f32
    %15 = vector.broadcast %cst_6 : f32 to vector<8x1xf32>
    %16 = arith.divf %14, %15 : vector<8x1xf32>
    %17 = arith.mulf %12, %12 : vector<8x256xf32>
    %cst_7 = arith.constant dense<0.000000e+00> : vector<8xf32>
    %18 = vector.multi_reduction <add>, %17, %cst_7 [1] : vector<8x256xf32> to vector<8xf32>
    %19 = vector.shape_cast %18 : vector<8xf32> to vector<8x1xf32>
    %cst_8 = arith.constant 2.560000e+02 : f32
    %20 = vector.broadcast %cst_8 : f32 to vector<8x1xf32>
    %21 = arith.divf %19, %20 : vector<8x1xf32>
    %22 = arith.mulf %16, %16 : vector<8x1xf32>
    %23 = arith.subf %21, %22 : vector<8x1xf32>
    %cst_9 = arith.constant 0.000000e+00 : f32
    %24 = vector.broadcast %cst_9 : f32 to vector<8x1xf32>
    %25 = arith.maximumf %23, %24 : vector<8x1xf32>
    %cst_10 = arith.constant 9.99999974E-6 : f32
    %26 = vector.broadcast %cst_10 : f32 to vector<8x1xf32>
    %27 = arith.addf %25, %26 : vector<8x1xf32>
    %28 = math.rsqrt %27 : vector<8x1xf32>
    %29 = vector.broadcast %16 : vector<8x1xf32> to vector<8x256xf32>
    %30 = arith.subf %12, %29 : vector<8x256xf32>
    %31 = vector.broadcast %28 : vector<8x1xf32> to vector<8x256xf32>
    %32 = arith.mulf %30, %31 : vector<8x256xf32>
    %33 = vector.broadcast %2 : vector<1x256xf32> to vector<8x256xf32>
    %34 = arith.mulf %32, %33 : vector<8x256xf32>
    %35 = vector.broadcast %3 : vector<1x256xf32> to vector<8x256xf32>
    %36 = arith.addf %34, %35 : vector<8x256xf32>
    %cst_11 = arith.constant 0.000000e+00 : f32
    %37 = vector.broadcast %cst_11 : f32 to vector<8x256xf32>
    %38 = arith.maximumf %36, %37 : vector<8x256xf32>
    %c0_12 = arith.constant 0 : index
    %c0_13 = arith.constant 0 : index
    %39 = vector.load %arg3[%c0_12, %c0_13] : memref<256x256xf32, #tpu.memory_space<vmem>>, vector<256x256xf32>
    %cst_14 = arith.constant dense<0.000000e+00> : vector<8x256xf32>
    %40 = tpu.matmul %38, %39, %cst_14 {dimension_numbers = #tpu.dot_dimension_numbers<[1], [0], [0], [1], [0, 0, 1, 1], [], []>} : vector<8x256xf32>, vector<256x256xf32>, vector<8x256xf32> -> vector<8x256xf32>
    %41 = vector.broadcast %4 : vector<1x256xf32> to vector<8x256xf32>
    %42 = arith.addf %40, %41 : vector<8x256xf32>
    %cst_15 = arith.constant dense<0.000000e+00> : vector<8xf32>
    %43 = vector.multi_reduction <add>, %42, %cst_15 [1] : vector<8x256xf32> to vector<8xf32>
    %44 = vector.shape_cast %43 : vector<8xf32> to vector<8x1xf32>
    %cst_16 = arith.constant 2.560000e+02 : f32
    %45 = vector.broadcast %cst_16 : f32 to vector<8x1xf32>
    %46 = arith.divf %44, %45 : vector<8x1xf32>
    %47 = arith.mulf %42, %42 : vector<8x256xf32>
    %cst_17 = arith.constant dense<0.000000e+00> : vector<8xf32>
    %48 = vector.multi_reduction <add>, %47, %cst_17 [1] : vector<8x256xf32> to vector<8xf32>
    %49 = vector.shape_cast %48 : vector<8xf32> to vector<8x1xf32>
    %cst_18 = arith.constant 2.560000e+02 : f32
    %50 = vector.broadcast %cst_18 : f32 to vector<8x1xf32>
    %51 = arith.divf %49, %50 : vector<8x1xf32>
    %52 = arith.mulf %46, %46 : vector<8x1xf32>
    %53 = arith.subf %51, %52 : vector<8x1xf32>
    %cst_19 = arith.constant 0.000000e+00 : f32
    %54 = vector.broadcast %cst_19 : f32 to vector<8x1xf32>
    %55 = arith.maximumf %53, %54 : vector<8x1xf32>
    %cst_20 = arith.constant 9.99999974E-6 : f32
    %56 = vector.broadcast %cst_20 : f32 to vector<8x1xf32>
    %57 = arith.addf %55, %56 : vector<8x1xf32>
    %58 = math.rsqrt %57 : vector<8x1xf32>
    %59 = vector.broadcast %46 : vector<8x1xf32> to vector<8x256xf32>
    %60 = arith.subf %42, %59 : vector<8x256xf32>
    %61 = vector.broadcast %58 : vector<8x1xf32> to vector<8x256xf32>
    %62 = arith.mulf %60, %61 : vector<8x256xf32>
    %63 = vector.broadcast %5 : vector<1x256xf32> to vector<8x256xf32>
    %64 = arith.mulf %62, %63 : vector<8x256xf32>
    %65 = vector.broadcast %6 : vector<1x256xf32> to vector<8x256xf32>
    %66 = arith.addf %64, %65 : vector<8x256xf32>
    %cst_21 = arith.constant 0.000000e+00 : f32
    %67 = vector.broadcast %cst_21 : f32 to vector<8x256xf32>
    %68 = arith.maximumf %66, %67 : vector<8x256xf32>
    %c0_22 = arith.constant 0 : index
    %c0_23 = arith.constant 0 : index
    %69 = vector.load %arg4[%c0_22, %c0_23] : memref<256x128xf32, #tpu.memory_space<vmem>>, vector<256x128xf32>
    %cst_24 = arith.constant dense<0.000000e+00> : vector<8x128xf32>
    %70 = tpu.matmul %68, %69, %cst_24 {dimension_numbers = #tpu.dot_dimension_numbers<[1], [0], [0], [1], [0, 0, 1, 1], [], []>} : vector<8x256xf32>, vector<256x128xf32>, vector<8x128xf32> -> vector<8x128xf32>
    %71 = vector.broadcast %7 : vector<1x128xf32> to vector<8x128xf32>
    %72 = arith.addf %70, %71 : vector<8x128xf32>
    %cst_25 = arith.constant dense<0xFF800000> : vector<8xf32>
    %73 = vector.multi_reduction <maximumf>, %72, %cst_25 [1] : vector<8x128xf32> to vector<8xf32>
    %74 = vector.shape_cast %73 : vector<8xf32> to vector<8x1xf32>
    %75 = vector.broadcast %74 : vector<8x1xf32> to vector<8x128xf32>
    %76 = arith.subf %72, %75 : vector<8x128xf32>
    %77 = math.exp %76 : vector<8x128xf32>
    %cst_26 = arith.constant dense<0.000000e+00> : vector<8xf32>
    %78 = vector.multi_reduction <add>, %77, %cst_26 [1] : vector<8x128xf32> to vector<8xf32>
    %79 = vector.shape_cast %78 : vector<8xf32> to vector<8x1xf32>
    %80 = tpu.reciprocal %79 {approx = true} : vector<8x1xf32> -> vector<8x1xf32>
    %81 = arith.mulf %79, %80 : vector<8x1xf32>
    %cst_27 = arith.constant 2.000000e+00 : f32
    %82 = vector.broadcast %cst_27 : f32 to vector<8x1xf32>
    %83 = arith.subf %82, %81 : vector<8x1xf32>
    %84 = arith.mulf %80, %83 : vector<8x1xf32>
    %85 = vector.broadcast %84 : vector<8x1xf32> to vector<8x128xf32>
    %86 = arith.mulf %77, %85 : vector<8x128xf32>
    %c0_28 = arith.constant 0 : index
    %c0_29 = arith.constant 0 : index
    %87 = vector.load %arg6[%c0_28, %c0_29] : memref<8x128xf32, #tpu.memory_space<vmem>>, vector<8x128xf32>
    tpu.vector_store %arg6[%c0_28, %c0_29], %86 {strides = array<i32>} : memref<8x128xf32, #tpu.memory_space<vmem>>, vector<8x128xf32>,
    return
  }
  func.func @transform_0(%arg0: i32) -> (i32, i32) {
    %c0_i32 = arith.constant 0 : i32
    %c0_i32_0 = arith.constant 0 : i32
    return %arg0, %c0_i32 : i32, i32
  }
  func.func @transform_1(%arg0: i32) -> (i32, i32) {
    %c0_i32 = arith.constant 0 : i32
    %c0_i32_0 = arith.constant 0 : i32
    %c0_i32_1 = arith.constant 0 : i32
    return %c0_i32, %c0_i32_0 : i32, i32
  }
  func.func @transform_2(%arg0: i32) -> (i32, i32) {
    %c0_i32 = arith.constant 0 : i32
    %c0_i32_0 = arith.constant 0 : i32
    %c0_i32_1 = arith.constant 0 : i32
    return %c0_i32, %c0_i32_0 : i32, i32
  }
  func.func @transform_3(%arg0: i32) -> (i32, i32) {
    %c0_i32 = arith.constant 0 : i32
    %c0_i32_0 = arith.constant 0 : i32
    %c0_i32_1 = arith.constant 0 : i32
    return %c0_i32, %c0_i32_0 : i32, i32
  }
  func.func @transform_4(%arg0: i32) -> (i32, i32) {
    %c0_i32 = arith.constant 0 : i32
    %c0_i32_0 = arith.constant 0 : i32
    %c0_i32_1 = arith.constant 0 : i32
    return %c0_i32, %c0_i32_0 : i32, i32
  }
  func.func @transform_5(%arg0: i32) -> (i32, i32) {
    %c0_i32 = arith.constant 0 : i32
    %c0_i32_0 = arith.constant 0 : i32
    return %arg0, %c0_i32 : i32, i32
  }
}

</mosaic_0001>

<llo_original>
// kernel: tpu_custom_call.1
$region0: #{tpu_custom_call.1}
  #allocation0 [shape = 'u32[]', space=smem, size = 0x4, offset = 0x4, fixed_abs, tag = 'smem constant byte address 0x4 - core index']
  #allocation1 [shape = 'u32[144,128]{1,0:T(1,128)}', space=vmem, size = 0x12000, scoped, tag = 'internal scratch']
  %s0 = inlined_call_operand.hbm [shape: f32[8,32], index: 0, kind: input, shape index: {}]
  %s1 = inlined_call_operand.hbm [shape: f32[32,256], index: 1, kind: input, shape index: {}]
  %s2 = inlined_call_operand.hbm [shape: f32[256,256], index: 2, kind: input, shape index: {}]
  %s3 = inlined_call_operand.hbm [shape: f32[256,128], index: 3, kind: input, shape index: {}]
  %s4 = inlined_call_operand.hbm [shape: f32[8,256], index: 4, kind: input, shape index: {}]
  %s5 = inlined_call_operand.hbm [shape: f32[8,128], index: 5, kind: output, shape index: {}]
  %s6 = sld [smem:[#allocation0]]
  $region50: #{tpu_custom_call.1} parent=0
    _
  %s8 = ssub.s32 1, %s6
  %s9 = scalar_select 0, %s8, %s6
  $region1: #{tpu_custom_call.1} parent=0
    #allocation2 [shape = 'u8[4096]{0}', space=vmem, size = 0x1000, scoped, tag = 'input window, operand 0, single buffered']
    #allocation3 [shape = 's32[1]{0}', space=sflag, size = 0x4, scoped, tag = 'scoped memory for tpu_custom_call.1']
    #allocation4 [shape = 's32[1]{0}', space=sflag, size = 0x4, scoped, tag = 'scoped memory for tpu_custom_call.1']
    #allocation5 [shape = 'u8[32768]{0}', space=vmem, size = 0x8000, scoped, tag = 'input window, operand 1, single buffered']
    #allocation6 [shape = 's32[1]{0}', space=sflag, size = 0x4, scoped, tag = 'scoped memory for tpu_custom_call.1']
    #allocation7 [shape = 'u8[262144]{0}', space=vmem, size = 0x40000, scoped, tag = 'input window, operand 2, single buffered']
    #allocation8 [shape = 'u8[131072]{0}', space=vmem, size = 0x20000, scoped, tag = 'input window, operand 3, single buffered']
    #allocation9 [shape = 's32[1]{0}', space=sflag, size = 0x4, scoped, tag = 'scoped memory for tpu_custom_call.1']
    #allocation10 [shape = 'u8[8192]{0}', space=vmem, size = 0x2000, scoped, tag = 'input window, operand 4, single buffered']
    #allocation11 [shape = 'u8[4096]{0}', space=vmem, size = 0x1000, scoped, tag = 'output window, operand 0, single buffered']
    %10 = vsyncpa [#allocation3], 0
    %11 = vsyncpa [#allocation6], 0
    %12 = vsyncpa [#allocation9], 0
    %13 = vsyncpa [#allocation4], 0
    // Predicated region
    $region2: #{tpu_custom_call.1} parent=1 // pred_check
      _
    $region3: #{tpu_custom_call.1} parent=1 // pred_check_branch
      %15 = sbr.rel (0) target = $region5
    $region4: #{tpu_custom_call.1} parent=1 // pred_region
      %s17 = ssub.s32 128, 128
      %18 = vsyncadd [#allocation3], %s17
      %s20 = sshll.u32 [#allocation2], 4
      %s21 = int_to_ptr.vmem [resolvable:$true] %s20
      %23 = dma.hbm_to_vmem [thread:$0]  %s0, 128, %s21, [#allocation3]
    $region5: #{tpu_custom_call.1} parent=1 // pred_fallthru
      _
    // Predicated region
    $region6: #{tpu_custom_call.1} parent=1 // pred_check
      _
    $region7: #{tpu_custom_call.1} parent=1 // pred_check_branch
      %25 = sbr.rel (0) target = $region9
    $region8: #{tpu_custom_call.1} parent=1 // pred_region
      %s27 = ssub.s32 1024, 1024
      %28 = vsyncadd [#allocation6], %s27
      %s29 = sshll.u32 [#allocation5], 4
      %s30 = int_to_ptr.vmem [resolvable:$true] %s29
      %35 = dma.hbm_to_vmem [thread:$0]  %s1, 1024, %s30, [#allocation6], 256, 256, 16
    $region9: #{tpu_custom_call.1} parent=1 // pred_fallthru
      _
    // Predicated region
    $region10: #{tpu_custom_call.1} parent=1 // pred_check
      _
    $region11: #{tpu_custom_call.1} parent=1 // pred_check_branch
      %37 = sbr.rel (0) target = $region13
    $region12: #{tpu_custom_call.1} parent=1 // pred_region
      %s39 = ssub.s32 8192, 8192
      %40 = vsyncadd [#allocation6], %s39
      %s41 = sshll.u32 [#allocation7], 4
      %s42 = int_to_ptr.vmem [resolvable:$true] %s41
      %47 = dma.hbm_to_vmem [thread:$0]  %s2, 8192, %s42, [#allocation6], 256, 256, 16
    $region13: #{tpu_custom_call.1} parent=1 // pred_fallthru
      _
    // Predicated region
    $region14: #{tpu_custom_call.1} parent=1 // pred_check
      _
    $region15: #{tpu_custom_call.1} parent=1 // pred_check_branch
      %49 = sbr.rel (0) target = $region17
    $region16: #{tpu_custom_call.1} parent=1 // pred_region
      %s51 = ssub.s32 4096, 4096
      %52 = vsyncadd [#allocation9], %s51
      %s53 = sshll.u32 [#allocation8], 4
      %s54 = int_to_ptr.vmem [resolvable:$true] %s53
      %59 = dma.hbm_to_vmem [thread:$0]  %s3, 4096, %s54, [#allocation9], 128, 128, 8
    $region17: #{tpu_custom_call.1} parent=1 // pred_fallthru
      _
    // Predicated region
    $region18: #{tpu_custom_call.1} parent=1 // pred_check
      _
    $region19: #{tpu_custom_call.1} parent=1 // pred_check_branch
      %61 = sbr.rel (0) target = $region21
    $region20: #{tpu_custom_call.1} parent=1 // pred_region
      %s63 = ssub.s32 256, 256
      %64 = vsyncadd [#allocation9], %s63
      %s66 = sshll.u32 [#allocation10], 4
      %s67 = int_to_ptr.vmem [resolvable:$true] %s66
      %69 = dma.hbm_to_vmem [thread:$0]  %s4, 256, %s67, [#allocation9]
    $region21: #{tpu_custom_call.1} parent=1 // pred_fallthru
      _
    // Predicated region
    $region22: #{tpu_custom_call.1} parent=1 // pred_check
      _
    $region23: #{tpu_custom_call.1} parent=1 // pred_check_branch
      %71 = sbr.rel (0) target = $region25
    $region24: #{tpu_custom_call.1} parent=1 // pred_region
      %72 = dma.done [#allocation3], 128
    $region25: #{tpu_custom_call.1} parent=1 // pred_fallthru
      _
    // Predicated region
    $region26: #{tpu_custom_call.1} parent=1 // pred_check
      _
    $region27: #{tpu_custom_call.1} parent=1 // pred_check_branch
      %74 = sbr.rel (0) target = $region29
    $region28: #{tpu_custom_call.1} parent=1 // pred_region
      %75 = dma.done [#allocation6], 1024
    $region29: #{tpu_custom_call.1} parent=1 // pred_fallthru
      _
    // Predicated region
    $region30: #{tpu_custom_call.1} parent=1 // pred_check
      _
    $region31: #{tpu_custom_call.1} parent=1 // pred_check_branch
      %77 = sbr.rel (0) target = $region33
    $region32: #{tpu_custom_call.1} parent=1 // pred_region
      %78 = dma.done [#allocation6], 8192
    $region33: #{tpu_custom_call.1} parent=1 // pred_fallthru
      _
    // Predicated region
    $region34: #{tpu_custom_call.1} parent=1 // pred_check
      _
    $region35: #{tpu_custom_call.1} parent=1 // pred_check_branch
      %80 = sbr.rel (0) target = $region37
    $region36: #{tpu_custom_call.1} parent=1 // pred_region
      %81 = dma.done [#allocation9], 4096
    $region37: #{tpu_custom_call.1} parent=1 // pred_fallthru
      _
    // Predicated region
    $region38: #{tpu_custom_call.1} parent=1 // pred_check
      _
    $region39: #{tpu_custom_call.1} parent=1 // pred_check_branch
      %83 = sbr.rel (0) target = $region41
    $region40: #{tpu_custom_call.1} parent=1 // pred_region
      %84 = dma.done [#allocation9], 256
    $region41: #{tpu_custom_call.1} parent=1 // pred_fallthru
      _
    %v85 = vld [vmem:[#allocation10] sm:$0xff]
    %v86 = vld [vmem:[#allocation10 + $0x8] sm:$0xff]
    %v87 = vld [vmem:[#allocation2] sm:$0xff]
    %v88 = vld [vmem:[#allocation5] sm:$0xff]
    %v89 = vld [vmem:[#allocation5 + $0x8] sm:$0xff]
    %v90 = vld [vmem:[#allocation5 + $0x10] sm:$0xff]
    %v91 = vld [vmem:[#allocation5 + $0x18] sm:$0xff]
    %v92 = vld [vmem:[#allocation5 + $0x20] sm:$0xff]
    %v93 = vld [vmem:[#allocation5 + $0x28] sm:$0xff]
    %v94 = vld [vmem:[#allocation5 + $0x30] sm:$0xff]
    %v95 = vld [vmem:[#allocation5 + $0x38] sm:$0xff]
    %v96 = vlaneseq
    %v97 = vshrl.u32 %v96, 7
    %v98 = vsub.s32 0, %v97
    %v99 = vrot.slane %v85, %v98
    %v100 = vlaneseq
    %v101 = vshrl.u32 %v100, 7
    %v102 = vsub.s32 0, %v101
    %v103 = vrot.slane %v86, %v102
    %vm104 = vcmask 261120
    %v106 = vsel %vm104, %v87, 0
    %108 = vmatprep.subr.mxu0 %v89
    %109 = vmatpush1.msra.mxu0 %v88
    %110 = vmatprep.subr.mxu0 %v91
    %111 = vmatpush1.msra.mxu0 %v90
    %112 = vmatprep.subr.mxu0 %v93
    %113 = vmatpush1.msra.mxu0 %v92
    %114 = vmatprep.subr.mxu0 %v95
    %115 = vmatpush1.msra.mxu0 %v94
    %116 = vmatprep.subr.mxu0 0.0
    %117 = vmatpush1.msra.mxu0 0.0
    %118 = vmatprep.subr.mxu0 0.0
    %119 = vmatpush1.msra.mxu0 0.0
    %120 = vmatprep.subr.mxu0 0.0
    %121 = vmatpush1.msra.mxu0 0.0
    %122 = vmatprep.subr.mxu0 0.0
    %123 = vmatpush1.msra.mxu0 0.0
    %124 = vmatprep.subr.mxu0 0.0
    %125 = vmatpush1.msra.mxu0 0.0
    %126 = vmatprep.subr.mxu0 0.0
    %127 = vmatpush1.msra.mxu0 0.0
    %128 = vmatprep.subr.mxu0 0.0
    %129 = vmatpush1.msra.mxu0 0.0
    %130 = vmatprep.subr.mxu0 0.0
    %131 = vmatpush1.msra.mxu0 0.0
    %132 = vmatprep.subr.mxu0 0.0
    %133 = vmatpush1.msra.mxu0 0.0
    %134 = vmatprep.subr.mxu0 0.0
    %135 = vmatpush1.msra.mxu0 0.0
    %136 = vmatprep.subr.mxu0 0.0
    %137 = vmatpush1.msra.mxu0 0.0
    %138 = vmatprep.subr.mxu0 0.0
    %139 = vmatpush1.msra.mxu0 0.0
    %140 = vmatprep.subr.mxu0 0.0
    %141 = vmatpush1.msra.mxu0 0.0
    %142 = vmatprep.subr.mxu0 0.0
    %143 = vmatpush1.msra.mxu0 0.0
    %144 = vmatprep.subr.mxu0 0.0
    %145 = vmatpush1.msra.mxu0 0.0
    %146 = vmatprep.subr.mxu0 0.0
    %147 = vmatpush1.msra.mxu0 0.0
    %148 = vmatprep.subr.mxu0 0.0
    %149 = vmatpush1.msra.mxu0 0.0
    %150 = vmatprep.subr.mxu0 0.0
    %151 = vmatpush1.msra.mxu0 0.0
    %152 = vmatprep.subr.mxu0 0.0
    %153 = vmatpush1.msra.mxu0 0.0
    %154 = vmatprep.subr.mxu0 0.0
    %155 = vmatpush1.msra.mxu0 0.0
    %156 = vmatprep.subr.mxu0 0.0
    %157 = vmatpush1.msra.mxu0 0.0
    %158 = vmatprep.subr.mxu0 0.0
    %159 = vmatpush1.msra.mxu0 0.0
    %160 = vmatprep.subr.mxu0 0.0
    %161 = vmatpush1.msra.mxu0 0.0
    %162 = vmatprep.subr.mxu0 0.0
    %163 = vmatpush1.msra.mxu0 0.0
    %164 = vmatprep.subr.mxu0 0.0
    %165 = vmatpush1.msra.mxu0 0.0
    %166 = vmatprep.subr.mxu0 0.0
    %167 = vmatpush1.msra.mxu0 0.0
    %168 = vmatprep.subr.mxu0 0.0
    %169 = vmatpush1.msra.mxu0 0.0
    %170 = vmatprep.subr.mxu0 0.0
    %171 = vmatpush1.msra.mxu0 0.0
    %172 = vmatprep.mubr.f32.mxu0 0.0
    %173 = vmatmul.mubr.f32.gmra.mrb[0].mxu0 %v106
    %v174 = vpop.f32.mrb[0].mxu0
    %v175 = vadd.f32 %v99, %v174
    %v176 = vpop.f32.mrb[0].mxu0
    %v177 = vadd.f32 %v103, %v176
    %178 = vdwg.mxu0
    %v179 = vadd.f32 %v175, %v177
    %180 = vadd.xlane.f32.xlu0 %v179
    %v181 = vpop.xlane.xlu0 %180
    %v182 = vrcp.pop 256.0
    %v183 = vmul.f32 %v181, %v182
    %v184 = vmul.f32 %v175, %v175
    %v185 = vmul.f32 %v177, %v177
    %v186 = vadd.f32 %v184, %v185
    %187 = vadd.xlane.f32.xlu0 %v186
    %v188 = vpop.xlane.xlu0 %187
    %v189 = vmul.f32 %v188, %v182
    %v190 = vmul.f32 %v183, %v183
    %v191 = vsub.f32 %v189, %v190
    %v192 = vmax.f32 %v191, 0.0
    %v193 = vadd.f32 %v192, 1e-05
    %v194 = vrsqrt.pop %v193
    %v195 = vsub.f32 %v175, %v183
    %v196 = vsub.f32 %v177, %v183
    %v197 = vmul.f32 %v195, %v194
    %v198 = vmul.f32 %v196, %v194
    %v199 = vlaneseq
    %v200 = vshrl.u32 %v199, 7
    %v201 = vsub.s32 1, %v200
    %v202 = vrot.slane %v85, %v201
    %v203 = vlaneseq
    %v204 = vshrl.u32 %v203, 7
    %v205 = vsub.s32 1, %v204
    %v206 = vrot.slane %v86, %v205
    %v207 = vmul.f32 %v197, %v202
    %v208 = vmul.f32 %v198, %v206
    %v209 = vlaneseq
    %v210 = vshrl.u32 %v209, 7
    %v211 = vsub.s32 2, %v210
    %v212 = vrot.slane %v85, %v211
    %v213 = vlaneseq
    %v214 = vshrl.u32 %v213, 7
    %v215 = vsub.s32 2, %v214
    %v216 = vrot.slane %v86, %v215
    %v217 = vadd.f32 %v207, %v212
    %v218 = vadd.f32 %v208, %v216
    %v219 = vmax.f32 %v217, 0.0
    %v220 = vmax.f32 %v218, 0.0
    %v221 = vld [vmem:[#allocation7] sm:$0xff]
    %v222 = vld [vmem:[#allocation7 + $0x8] sm:$0xff]
    %v223 = vld [vmem:[#allocation7 + $0x10] sm:$0xff]
    %v224 = vld [vmem:[#allocation7 + $0x18] sm:$0xff]
    %v225 = vld [vmem:[#allocation7 + $0x20] sm:$0xff]
    %v226 = vld [vmem:[#allocation7 + $0x28] sm:$0xff]
    %v227 = vld [vmem:[#allocation7 + $0x30] sm:$0xff]
    %v228 = vld [vmem:[#allocation7 + $0x38] sm:$0xff]
    %v229 = vld [vmem:[#allocation7 + $0x40] sm:$0xff]
    %v230 = vld [vmem:[#allocation7 + $0x48] sm:$0xff]
    %v231 = vld [vmem:[#allocation7 + $0x50] sm:$0xff]
    %v232 = vld [vmem:[#allocation7 + $0x58] sm:$0xff]
    %v233 = vld [vmem:[#allocation7 + $0x60] sm:$0xff]
    %v234 = vld [vmem:[#allocation7 + $0x68] sm:$0xff]
    %v235 = vld [vmem:[#allocation7 + $0x70] sm:$0xff]
    %v236 = vld [vmem:[#allocation7 + $0x78] sm:$0xff]
    %v237 = vld [vmem:[#allocation7 + $0x80] sm:$0xff]
    %v238 = vld [vmem:[#allocation7 + $0x88] sm:$0xff]
    %v239 = vld [vmem:[#allocation7 + $0x90] sm:$0xff]
    %v240 = vld [vmem:[#allocation7 + $0x98] sm:$0xff]
    %v241 = vld [vmem:[#allocation7 + $0xa0] sm:$0xff]
    %v242 = vld [vmem:[#allocation7 + $0xa8] sm:$0xff]
    %v243 = vld [vmem:[#allocation7 + $0xb0] sm:$0xff]
    %v244 = vld [vmem:[#allocation7 + $0xb8] sm:$0xff]
    %v245 = vld [vmem:[#allocation7 + $0xc0] sm:$0xff]
    %v246 = vld [vmem:[#allocation7 + $0xc8] sm:$0xff]
    %v247 = vld [vmem:[#allocation7 + $0xd0] sm:$0xff]
    %v248 = vld [vmem:[#allocation7 + $0xd8] sm:$0xff]
    %v249 = vld [vmem:[#allocation7 + $0xe0] sm:$0xff]
    %v250 = vld [vmem:[#allocation7 + $0xe8] sm:$0xff]
    %v251 = vld [vmem:[#allocation7 + $0xf0] sm:$0xff]
    %v252 = vld [vmem:[#allocation7 + $0xf8] sm:$0xff]
    %v253 = vld [vmem:[#allocation7 + $0x100] sm:$0xff]
    %v254 = vld [vmem:[#allocation7 + $0x108] sm:$0xff]
    %v255 = vld [vmem:[#allocation7 + $0x110] sm:$0xff]
    %v256 = vld [vmem:[#allocation7 + $0x118] sm:$0xff]
    %v257 = vld [vmem:[#allocation7 + $0x120] sm:$0xff]
    %v258 = vld [vmem:[#allocation7 + $0x128] sm:$0xff]
    %v259 = vld [vmem:[#allocation7 + $0x130] sm:$0xff]
    %v260 = vld [vmem:[#allocation7 + $0x138] sm:$0xff]
    %v261 = vld [vmem:[#allocation7 + $0x140] sm:$0xff]
    %v262 = vld [vmem:[#allocation7 + $0x148] sm:$0xff]
    %v263 = vld [vmem:[#allocation7 + $0x150] sm:$0xff]
    %v264 = vld [vmem:[#allocation7 + $0x158] sm:$0xff]
    %v265 = vld [vmem:[#allocation7 + $0x160] sm:$0xff]
    %v266 = vld [vmem:[#allocation7 + $0x168] sm:$0xff]
    %v267 = vld [vmem:[#allocation7 + $0x170] sm:$0xff]
    %v268 = vld [vmem:[#allocation7 + $0x178] sm:$0xff]
    %v269 = vld [vmem:[#allocation7 + $0x180] sm:$0xff]
    %v270 = vld [vmem:[#allocation7 + $0x188] sm:$0xff]
    %v271 = vld [vmem:[#allocation7 + $0x190] sm:$0xff]
    %v272 = vld [vmem:[#allocation7 + $0x198] sm:$0xff]
    %v273 = vld [vmem:[#allocation7 + $0x1a0] sm:$0xff]
    %v274 = vld [vmem:[#allocation7 + $0x1a8] sm:$0xff]
    %v275 = vld [vmem:[#allocation7 + $0x1b0] sm:$0xff]
    %v276 = vld [vmem:[#allocation7 + $0x1b8] sm:$0xff]
    %v277 = vld [vmem:[#allocation7 + $0x1c0] sm:$0xff]
    %v278 = vld [vmem:[#allocation7 + $0x1c8] sm:$0xff]
    %v279 = vld [vmem:[#allocation7 + $0x1d0] sm:$0xff]
    %v280 = vld [vmem:[#allocation7 + $0x1d8] sm:$0xff]
    %v281 = vld [vmem:[#allocation7 + $0x1e0] sm:$0xff]
    %v282 = vld [vmem:[#allocation7 + $0x1e8] sm:$0xff]
    %v283 = vld [vmem:[#allocation7 + $0x1f0] sm:$0xff]
    %v284 = vld [vmem:[#allocation7 + $0x1f8] sm:$0xff]
    %v285 = vlaneseq
    %v286 = vshrl.u32 %v285, 7
    %v287 = vsub.s32 3, %v286
    %v288 = vrot.slane %v85, %v287
    %v289 = vlaneseq
    %v290 = vshrl.u32 %v289, 7
    %v291 = vsub.s32 3, %v290
    %v292 = vrot.slane %v86, %v291
    %293 = vmatprep.subr.mxu0 %v222
    %294 = vmatpush1.msra.mxu0 %v221
    %295 = vmatprep.subr.mxu0 %v224
    %296 = vmatpush1.msra.mxu0 %v223
    %297 = vmatprep.subr.mxu0 %v226
    %298 = vmatpush1.msra.mxu0 %v225
    %299 = vmatprep.subr.mxu0 %v228
    %300 = vmatpush1.msra.mxu0 %v227
    %301 = vmatprep.subr.mxu0 %v230
    %302 = vmatpush1.msra.mxu0 %v229
    %303 = vmatprep.subr.mxu0 %v232
    %304 = vmatpush1.msra.mxu0 %v231
    %305 = vmatprep.subr.mxu0 %v234
    %306 = vmatpush1.msra.mxu0 %v233
    %307 = vmatprep.subr.mxu0 %v236
    %308 = vmatpush1.msra.mxu0 %v235
    %309 = vmatprep.subr.mxu0 %v238
    %310 = vmatpush1.msra.mxu0 %v237
    %311 = vmatprep.subr.mxu0 %v240
    %312 = vmatpush1.msra.mxu0 %v239
    %313 = vmatprep.subr.mxu0 %v242
    %314 = vmatpush1.msra.mxu0 %v241
    %315 = vmatprep.subr.mxu0 %v244
    %316 = vmatpush1.msra.mxu0 %v243
    %317 = vmatprep.subr.mxu0 %v246
    %318 = vmatpush1.msra.mxu0 %v245
    %319 = vmatprep.subr.mxu0 %v248
    %320 = vmatpush1.msra.mxu0 %v247
    %321 = vmatprep.subr.mxu0 %v250
    %322 = vmatpush1.msra.mxu0 %v249
    %323 = vmatprep.subr.mxu0 %v252
    %324 = vmatpush1.msra.mxu0 %v251
    %325 = vmatprep.subr.mxu0 %v254
    %326 = vmatpush1.msra.mxu0 %v253
    %327 = vmatprep.subr.mxu0 %v256
    %328 = vmatpush1.msra.mxu0 %v255
    %329 = vmatprep.subr.mxu0 %v258
    %330 = vmatpush1.msra.mxu0 %v257
    %331 = vmatprep.subr.mxu0 %v260
    %332 = vmatpush1.msra.mxu0 %v259
    %333 = vmatprep.subr.mxu0 %v262
    %334 = vmatpush1.msra.mxu0 %v261
    %335 = vmatprep.subr.mxu0 %v264
    %336 = vmatpush1.msra.mxu0 %v263
    %337 = vmatprep.subr.mxu0 %v266
    %338 = vmatpush1.msra.mxu0 %v265
    %339 = vmatprep.subr.mxu0 %v268
    %340 = vmatpush1.msra.mxu0 %v267
    %341 = vmatprep.subr.mxu0 %v270
    %342 = vmatpush1.msra.mxu0 %v269
    %343 = vmatprep.subr.mxu0 %v272
    %344 = vmatpush1.msra.mxu0 %v271
    %345 = vmatprep.subr.mxu0 %v274
    %346 = vmatpush1.msra.mxu0 %v273
    %347 = vmatprep.subr.mxu0 %v276
    %348 = vmatpush1.msra.mxu0 %v275
    %349 = vmatprep.subr.mxu0 %v278
    %350 = vmatpush1.msra.mxu0 %v277
    %351 = vmatprep.subr.mxu0 %v280
    %352 = vmatpush1.msra.mxu0 %v279
    %353 = vmatprep.subr.mxu0 %v282
    %354 = vmatpush1.msra.mxu0 %v281
    %355 = vmatprep.subr.mxu0 %v284
    %356 = vmatpush1.msra.mxu0 %v283
    %357 = vmatprep.mubr.f32.mxu0 %v220
    %358 = vmatmul.mubr.f32.gmra.mrb[0].mxu0 %v219
    %v359 = vpop.f32.mrb[0].mxu0
    %v360 = vadd.f32 %v288, %v359
    %v361 = vpop.f32.mrb[0].mxu0
    %v362 = vadd.f32 %v292, %v361
    %363 = vdwg.mxu0
    %v364 = vadd.f32 %v360, %v362
    %365 = vadd.xlane.f32.xlu0 %v364
    %v366 = vpop.xlane.xlu0 %365
    %v367 = vmul.f32 %v366, %v182
    %v368 = vmul.f32 %v360, %v360
    %v369 = vmul.f32 %v362, %v362
    %v370 = vadd.f32 %v368, %v369
    %371 = vadd.xlane.f32.xlu0 %v370
    %v372 = vpop.xlane.xlu0 %371
    %v373 = vmul.f32 %v372, %v182
    %v374 = vmul.f32 %v367, %v367
    %v375 = vsub.f32 %v373, %v374
    %v376 = vmax.f32 %v375, 0.0
    %v377 = vadd.f32 %v376, 1e-05
    %v378 = vrsqrt.pop %v377
    %v379 = vsub.f32 %v360, %v367
    %v380 = vsub.f32 %v362, %v367
    %v381 = vmul.f32 %v379, %v378
    %v382 = vmul.f32 %v380, %v378
    %v383 = vlaneseq
    %v384 = vshrl.u32 %v383, 7
    %v385 = vsub.s32 4, %v384
    %v386 = vrot.slane %v85, %v385
    %v387 = vlaneseq
    %v388 = vshrl.u32 %v387, 7
    %v389 = vsub.s32 4, %v388
    %v390 = vrot.slane %v86, %v389
    %v391 = vmul.f32 %v381, %v386
    %v392 = vmul.f32 %v382, %v390
    %v393 = vlaneseq
    %v394 = vshrl.u32 %v393, 7
    %v395 = vsub.s32 5, %v394
    %v396 = vrot.slane %v85, %v395
    %v397 = vlaneseq
    %v398 = vshrl.u32 %v397, 7
    %v399 = vsub.s32 5, %v398
    %v400 = vrot.slane %v86, %v399
    %v401 = vadd.f32 %v391, %v396
    %v402 = vadd.f32 %v392, %v400
    %v403 = vmax.f32 %v401, 0.0
    %v404 = vmax.f32 %v402, 0.0
    %v405 = vld [vmem:[#allocation8] sm:$0xff]
    %v406 = vld [vmem:[#allocation8 + $0x8] sm:$0xff]
    %v407 = vld [vmem:[#allocation8 + $0x10] sm:$0xff]
    %v408 = vld [vmem:[#allocation8 + $0x18] sm:$0xff]
    %v409 = vld [vmem:[#allocation8 + $0x20] sm:$0xff]
    %v410 = vld [vmem:[#allocation8 + $0x28] sm:$0xff]
    %v411 = vld [vmem:[#allocation8 + $0x30] sm:$0xff]
    %v412 = vld [vmem:[#allocation8 + $0x38] sm:$0xff]
    %v413 = vld [vmem:[#allocation8 + $0x40] sm:$0xff]
    %v414 = vld [vmem:[#allocation8 + $0x48] sm:$0xff]
    %v415 = vld [vmem:[#allocation8 + $0x50] sm:$0xff]
    %v416 = vld [vmem:[#allocation8 + $0x58] sm:$0xff]
    %v417 = vld [vmem:[#allocation8 + $0x60] sm:$0xff]
    %v418 = vld [vmem:[#allocation8 + $0x68] sm:$0xff]
    %v419 = vld [vmem:[#allocation8 + $0x70] sm:$0xff]
    %v420 = vld [vmem:[#allocation8 + $0x78] sm:$0xff]
    %v421 = vld [vmem:[#allocation8 + $0x80] sm:$0xff]
    %v422 = vld [vmem:[#allocation8 + $0x88] sm:$0xff]
    %v423 = vld [vmem:[#allocation8 + $0x90] sm:$0xff]
    %v424 = vld [vmem:[#allocation8 + $0x98] sm:$0xff]
    %v425 = vld [vmem:[#allocation8 + $0xa0] sm:$0xff]
    %v426 = vld [vmem:[#allocation8 + $0xa8] sm:$0xff]
    %v427 = vld [vmem:[#allocation8 + $0xb0] sm:$0xff]
    %v428 = vld [vmem:[#allocation8 + $0xb8] sm:$0xff]
    %v429 = vld [vmem:[#allocation8 + $0xc0] sm:$0xff]
    %v430 = vld [vmem:[#allocation8 + $0xc8] sm:$0xff]
    %v431 = vld [vmem:[#allocation8 + $0xd0] sm:$0xff]
    %v432 = vld [vmem:[#allocation8 + $0xd8] sm:$0xff]
    %v433 = vld [vmem:[#allocation8 + $0xe0] sm:$0xff]
    %v434 = vld [vmem:[#allocation8 + $0xe8] sm:$0xff]
    %v435 = vld [vmem:[#allocation8 + $0xf0] sm:$0xff]
    %v436 = vld [vmem:[#allocation8 + $0xf8] sm:$0xff]
    %v437 = vlaneseq
    %v438 = vshrl.u32 %v437, 7
    %v439 = vsub.s32 6, %v438
    %v440 = vrot.slane %v85, %v439
    %441 = vmatprep.subr.mxu0 0.0
    %442 = vmatpush1.msra.mxu0 %v405
    %443 = vmatprep.subr.mxu0 0.0
    %444 = vmatpush1.msra.mxu0 %v406
    %445 = vmatprep.subr.mxu0 0.0
    %446 = vmatpush1.msra.mxu0 %v407
    %447 = vmatprep.subr.mxu0 0.0
    %448 = vmatpush1.msra.mxu0 %v408
    %449 = vmatprep.subr.mxu0 0.0
    %450 = vmatpush1.msra.mxu0 %v409
    %451 = vmatprep.subr.mxu0 0.0
    %452 = vmatpush1.msra.mxu0 %v410
    %453 = vmatprep.subr.mxu0 0.0
    %454 = vmatpush1.msra.mxu0 %v411
    %455 = vmatprep.subr.mxu0 0.0
    %456 = vmatpush1.msra.mxu0 %v412
    %457 = vmatprep.subr.mxu0 0.0
    %458 = vmatpush1.msra.mxu0 %v413
    %459 = vmatprep.subr.mxu0 0.0
    %460 = vmatpush1.msra.mxu0 %v414
    %461 = vmatprep.subr.mxu0 0.0
    %462 = vmatpush1.msra.mxu0 %v415
    %463 = vmatprep.subr.mxu0 0.0
    %464 = vmatpush1.msra.mxu0 %v416
    %465 = vmatprep.subr.mxu0 0.0
    %466 = vmatpush1.msra.mxu0 %v417
    %467 = vmatprep.subr.mxu0 0.0
    %468 = vmatpush1.msra.mxu0 %v418
    %469 = vmatprep.subr.mxu0 0.0
    %470 = vmatpush1.msra.mxu0 %v419
    %471 = vmatprep.subr.mxu0 0.0
    %472 = vmatpush1.msra.mxu0 %v420
    %473 = vmatprep.subr.mxu0 0.0
    %474 = vmatpush1.msra.mxu0 %v421
    %475 = vmatprep.subr.mxu0 0.0
    %476 = vmatpush1.msra.mxu0 %v422
    %477 = vmatprep.subr.mxu0 0.0
    %478 = vmatpush1.msra.mxu0 %v423
    %479 = vmatprep.subr.mxu0 0.0
    %480 = vmatpush1.msra.mxu0 %v424
    %481 = vmatprep.subr.mxu0 0.0
    %482 = vmatpush1.msra.mxu0 %v425
    %483 = vmatprep.subr.mxu0 0.0
    %484 = vmatpush1.msra.mxu0 %v426
    %485 = vmatprep.subr.mxu0 0.0
    %486 = vmatpush1.msra.mxu0 %v427
    %487 = vmatprep.subr.mxu0 0.0
    %488 = vmatpush1.msra.mxu0 %v428
    %489 = vmatprep.subr.mxu0 0.0
    %490 = vmatpush1.msra.mxu0 %v429
    %491 = vmatprep.subr.mxu0 0.0
    %492 = vmatpush1.msra.mxu0 %v430
    %493 = vmatprep.subr.mxu0 0.0
    %494 = vmatpush1.msra.mxu0 %v431
    %495 = vmatprep.subr.mxu0 0.0
    %496 = vmatpush1.msra.mxu0 %v432
    %497 = vmatprep.subr.mxu0 0.0
    %498 = vmatpush1.msra.mxu0 %v433
    %499 = vmatprep.subr.mxu0 0.0
    %500 = vmatpush1.msra.mxu0 %v434
    %501 = vmatprep.subr.mxu0 0.0
    %502 = vmatpush1.msra.mxu0 %v435
    %503 = vmatprep.subr.mxu0 0.0
    %504 = vmatpush1.msra.mxu0 %v436
    %505 = vmatprep.mubr.f32.mxu0 %v404
    %506 = vmatmul.mubr.f32.gmra.mrb[0].mxu0 %v403
    %v507 = vpop.f32.mrb[0].mxu0
    %v508 = vadd.f32 %v440, %v507
    %v509 = vpop.f32.mrb[0].mxu0
    %510 = vdwg.mxu0
    %511 = vmax.xlane.f32.xlu0 %v508
    %v512 = vpop.xlane.xlu0 %511
    %v513 = vsub.f32 %v508, %v512
    %v514 = vmul.f32 %v513, 1.442695
    %v515 = vpow.pop %v514
    %516 = vadd.xlane.f32.xlu0 %v515
    %v517 = vpop.xlane.xlu0 %516
    %v518 = vrcp.pop %v517
    %v519 = vmul.f32 %v517, %v518
    %v520 = vsub.f32 2.0, %v519
    %v521 = vmul.f32 %v518, %v520
    %v522 = vmul.f32 %v515, %v521
    %523 = vst [vmem:[#allocation11] sm:$0xff] %v522
    // Predicated region
    $region42: #{tpu_custom_call.1} parent=1 // pred_check
      _
    $region43: #{tpu_custom_call.1} parent=1 // pred_check_branch
      %525 = sbr.rel (0) target = $region45
    $region44: #{tpu_custom_call.1} parent=1 // pred_region
      %s527 = ssub.s32 128, 128
      %528 = vsyncadd [#allocation4], %s527
      %s530 = sshll.u32 [#allocation11], 4
      %s531 = int_to_ptr.vmem [resolvable:$true] %s530
      %533 = dma.vmem_to_hbm [thread:$0]  %s531, 128, %s5, [#allocation4]
    $region45: #{tpu_custom_call.1} parent=1 // pred_fallthru
      _
    // Predicated region
    $region46: #{tpu_custom_call.1} parent=1 // pred_check
      _
    $region47: #{tpu_custom_call.1} parent=1 // pred_check_branch
      %535 = sbr.rel (0) target = $region49
    $region48: #{tpu_custom_call.1} parent=1 // pred_region
      %536 = dma.done [#allocation4], 128
    $region49: #{tpu_custom_call.1} parent=1 // pred_fallthru
      _
    %537 = vsyncpa [#allocation3], 1
    %538 = vsyncpa [#allocation6], 1
    %539 = vsyncpa [#allocation9], 1
    %540 = vsyncpa [#allocation4], 1

</llo_original>
